<compile_context>
chip_gen: v5e
topology: v5e:2x2
jax: 0.10.0
libtpu: 0.0.40
codegen_flags: <defaults>
</compile_context>

<pallas_src>
import jax
import jax.numpy as jnp
from jax.experimental import pallas as pl
from jax.experimental.pallas import tpu as pltpu

_EPS = 1e-5  # nn.BatchNorm2d default eps


def _choose_tiles(hw: int, *, max_lanes: int = 1024,
                  target_block_bytes: int = 4 * 1024 * 1024):
    """Pick (Lw, rows_total, R): lane tile, row extent, row tile.

    Lw is the largest multiple of 128 that divides hw (capped at max_lanes);
    the flattened H*W plane is viewed as (rows_total, Lw). R is a multiple of 8
    (or the full row extent) sized so one block carries ~target_block_bytes of
    f32 payload.
    """
    lw = 0
    d = 128
    lim = min(hw, max_lanes)
    while d <= lim:
        if hw % d == 0:
            lw = d
        d += 128
    if lw == 0:
        # No lane-dense divisor: keep the whole flattened axis as the lane dim
        # (block last dim == full array dim => always legal).
        return hw, 1, 1
    rows_total = hw // lw
    target_rows = max(8, target_block_bytes // (lw * 4))
    if rows_total <= target_rows:
        return lw, rows_total, rows_total        # one row-block, full extent
    r = (target_rows // 8) * 8                   # multiple of 8, <= rows_total
    return lw, rows_total, r


def _make_stats_kernel(rows_total: int, row_tile: int, masked: bool):
    """Per-block partial (sum, sum_sq) along the row (sublane) axis."""
    if not masked:
        def stats_kernel(x_ref, sum_ref, sq_ref):
            x = x_ref[0].astype(jnp.float32)                    # (R, Lw)
            sum_ref[0] = jnp.sum(x, axis=0, keepdims=True)      # (1, Lw)
            sq_ref[0] = jnp.sum(x * x, axis=0, keepdims=True)
    else:
        def stats_kernel(x_ref, sum_ref, sq_ref):
            t = pl.program_id(1)
            x = x_ref[0].astype(jnp.float32)                    # (R, Lw)
            row = jax.lax.broadcasted_iota(jnp.int32, x.shape, 0)
            valid = row < (rows_total - t * row_tile)
            xm = jnp.where(valid, x, 0.0)
            sum_ref[0] = jnp.sum(xm, axis=0, keepdims=True)
            sq_ref[0] = jnp.sum(xm * xm, axis=0, keepdims=True)
    return stats_kernel


def _make_normalize_kernel(num_channels: int):
    def normalize_kernel(scale_ref, shift_ref, x_ref, o_ref):
        c = pl.program_id(0) % num_channels      # channel of this plane
        s = scale_ref[c]                         # SMEM scalar reads
        b = shift_ref[c]
        x = x_ref[0].astype(jnp.float32)         # (R, Lw)
        o_ref[0] = (x * s + b).astype(o_ref.dtype)
    return normalize_kernel


def retina_preprocessing(x, gamma, beta, *, eps=_EPS):
    """BatchNorm2d training-mode forward on NCHW input (batch statistics + affine)."""
    N, C, H, W = x.shape
    hw = H * W
    out_dtype = x.dtype if jnp.issubdtype(x.dtype, jnp.floating) else jnp.float32

    lw, rows_total, r = _choose_tiles(hw)
    nc = N * C
    t_blocks = (rows_total + r - 1) // r
    masked = (rows_total % r) != 0

    # Free layout change only (merge/split of trailing contiguous dims).
    xr = x.reshape(nc, rows_total, lw)

    x_spec = pl.BlockSpec((1, r, lw), lambda i, t: (i, t, 0))
    part_spec = pl.BlockSpec((1, 1, lw), lambda i, t: (i * t_blocks + t, 0, 0))

    cparams = pltpu.CompilerParams(
        dimension_semantics=("parallel", "parallel"),
        vmem_limit_bytes=32 * 1024 * 1024,
    )

    # Pass 1: per-block partial (sum, sum_sq); every grid point writes its own
    # tiny output block -> no scratch, no sequential dependency, megacore-safe.
    psum, psq = pl.pallas_call(
        _make_stats_kernel(rows_total, r, masked),
        out_shape=(jax.ShapeDtypeStruct((nc * t_blocks, 1, lw), jnp.float32),
                   jax.ShapeDtypeStruct((nc * t_blocks, 1, lw), jnp.float32)),
        grid=(nc, t_blocks),
        in_specs=[x_spec],
        out_specs=(part_spec, part_spec),
        compiler_params=cparams,
    )(xr)

    # Tiny per-channel combine + affine fold (plain JAX; negligible work).
    count = float(N * hw)
    sums = psum.reshape(N, C, t_blocks * lw).sum(axis=(0, 2))
    sqs = psq.reshape(N, C, t_blocks * lw).sum(axis=(0, 2))
    mean = sums / count
    var = jnp.maximum(sqs / count - mean * mean, 0.0)   # biased variance
    inv_std = jax.lax.rsqrt(var + eps)
    scale = gamma.astype(jnp.float32) * inv_std         # (C,)
    shift = beta.astype(jnp.float32) - mean * scale     # (C,)

    # Pass 2: y = x * scale[c] + shift[c], folded affine, lane/sublane-dense.
    smem_spec = pl.BlockSpec(memory_space=pltpu.MemorySpace.SMEM)
    out = pl.pallas_call(
        _make_normalize_kernel(C),
        out_shape=jax.ShapeDtypeStruct((nc, rows_total, lw), out_dtype),
        grid=(nc, t_blocks),
        in_specs=[smem_spec, smem_spec, x_spec],
        out_specs=x_spec,
        compiler_params=cparams,
    )(scale, shift, xr)

    return out.reshape(N, C, H, W)


def _reference(x, gamma, beta, eps=_EPS):
    xf = x.astype(jnp.float32)
    mean = jnp.mean(xf, axis=(0, 2, 3), keepdims=True)
    var = jnp.mean(jnp.square(xf - mean), axis=(0, 2, 3), keepdims=True)
    g = gamma.reshape(1, -1, 1, 1).astype(jnp.float32)
    b = beta.reshape(1, -1, 1, 1).astype(jnp.float32)
    return (xf - mean) * jax.lax.rsqrt(var + eps) * g + b


if __name__ == "__main__":
    key = jax.random.PRNGKey(0)
    kx, kg, kb = jax.random.split(key, 3)
    N, C, H, W = 2, 3, 16, 16            # BatchNorm2d(3) => C must be 3
    x = jax.random.normal(kx, (N, C, H, W), dtype=jnp.float32)

    # BatchNorm2d affine parameters (default init is ones/zeros; perturb slightly
    # to exercise the folded-affine path -- same module semantics).
    gamma = 1.0 + 0.1 * jax.random.normal(kg, (C,), dtype=jnp.float32)
    beta = 0.1 * jax.random.normal(kb, (C,), dtype=jnp.float32)

    y = retina_preprocessing(x, gamma, beta)
    y = jax.block_until_ready(y)

    y_ref = _reference(x, gamma, beta)
    assert y.shape == (N, C, H, W)
    err = float(jnp.max(jnp.abs(y.astype(jnp.float32) - y_ref)))
    assert err < 1e-4, f"max abs err {err}"

    print("KERNEL_OK")
</pallas_src>

<mosaic_0001>
module attributes {stable_mosaic.version = 11 : i64} {
  func.func @stats_kernel(%arg0: i32, %arg1: i32, %arg2: memref<1x1x256xf32, #tpu.memory_space<vmem>>, %arg3: memref<1x1x256xf32, #tpu.memory_space<vmem>>, %arg4: memref<1x1x256xf32, #tpu.memory_space<vmem>>) attributes {dimension_semantics = [#tpu.dimension_semantics<parallel>, #tpu.dimension_semantics<parallel>], iteration_bounds = array<i64: 6, 1>, scalar_prefetch = 0 : i64, scratch_operands = 0 : i64, tpu.core_type = #tpu.core_type<tc>, window_params = [{transform_indices = @transform_0, window_bounds = array<i64: 1, 1, 256>}, {transform_indices = @transform_1, window_bounds = array<i64: 1, 1, 256>}, {transform_indices = @transform_2, window_bounds = array<i64: 1, 1, 256>}]} {
    %c0 = arith.constant 0 : index
    %c0_0 = arith.constant 0 : index
    %c0_1 = arith.constant 0 : index
    %0 = vector.load %arg2[%c0, %c0_0, %c0_1] : memref<1x1x256xf32, #tpu.memory_space<vmem>>, vector<1x1x256xf32>
    %1 = vector.shape_cast %0 : vector<1x1x256xf32> to vector<1x256xf32>
    %cst = arith.constant dense<0.000000e+00> : vector<256xf32>
    %2 = vector.multi_reduction <add>, %1, %cst [0] : vector<1x256xf32> to vector<256xf32>
    %3 = vector.shape_cast %2 : vector<256xf32> to vector<1x256xf32>
    %c0_2 = arith.constant 0 : index
    %c0_3 = arith.constant 0 : index
    %c0_4 = arith.constant 0 : index
    %4 = vector.load %arg3[%c0_2, %c0_3, %c0_4] : memref<1x1x256xf32, #tpu.memory_space<vmem>>, vector<1x1x256xf32>
    %5 = vector.shape_cast %4 : vector<1x1x256xf32> to vector<1x256xf32>
    %6 = vector.shape_cast %3 : vector<1x256xf32> to vector<1x1x256xf32>
    tpu.vector_store %arg3[%c0_2, %c0_3, %c0_4], %6 {strides = array<i32>} : memref<1x1x256xf32, #tpu.memory_space<vmem>>, vector<1x1x256xf32>,
    %7 = arith.mulf %1, %1 : vector<1x256xf32>
    %cst_5 = arith.constant dense<0.000000e+00> : vector<256xf32>
    %8 = vector.multi_reduction <add>, %7, %cst_5 [0] : vector<1x256xf32> to vector<256xf32>
    %9 = vector.shape_cast %8 : vector<256xf32> to vector<1x256xf32>
    %c0_6 = arith.constant 0 : index
    %c0_7 = arith.constant 0 : index
    %c0_8 = arith.constant 0 : index
    %10 = vector.load %arg4[%c0_6, %c0_7, %c0_8] : memref<1x1x256xf32, #tpu.memory_space<vmem>>, vector<1x1x256xf32>
    %11 = vector.shape_cast %10 : vector<1x1x256xf32> to vector<1x256xf32>
    %12 = vector.shape_cast %9 : vector<1x256xf32> to vector<1x1x256xf32>
    tpu.vector_store %arg4[%c0_6, %c0_7, %c0_8], %12 {strides = array<i32>} : memref<1x1x256xf32, #tpu.memory_space<vmem>>, vector<1x1x256xf32>,
    return
  }
  func.func @transform_0(%arg0: i32, %arg1: i32) -> (i32, i32, i32) {
    %c0_i32 = arith.constant 0 : i32
    %c0_i32_0 = arith.constant 0 : i32
    return %arg0, %arg1, %c0_i32 : i32, i32, i32
  }
  func.func @transform_1(%arg0: i32, %arg1: i32) -> (i32, i32, i32) {
    %c1_i32 = arith.constant 1 : i32
    %0 = arith.muli %arg0, %c1_i32 : i32
    %1 = arith.addi %0, %arg1 : i32
    %c0_i32 = arith.constant 0 : i32
    %c0_i32_0 = arith.constant 0 : i32
    %c0_i32_1 = arith.constant 0 : i32
    return %1, %c0_i32, %c0_i32_0 : i32, i32, i32
  }
  func.func @transform_2(%arg0: i32, %arg1: i32) -> (i32, i32, i32) {
    %c1_i32 = arith.constant 1 : i32
    %0 = arith.muli %arg0, %c1_i32 : i32
    %1 = arith.addi %0, %arg1 : i32
    %c0_i32 = arith.constant 0 : i32
    %c0_i32_0 = arith.constant 0 : i32
    %c0_i32_1 = arith.constant 0 : i32
    return %1, %c0_i32, %c0_i32_0 : i32, i32, i32
  }
}

</mosaic_0001>

<llo_original>
// kernel: tpu_custom_call.1
$region0: #{tpu_custom_call.1}
  #allocation0 [shape = 'u32[]', space=smem, size = 0x4, offset = 0x4, fixed_abs, tag = 'smem constant byte address 0x4 - core index']
  #allocation1 [shape = 'u32[72,128]{1,0:T(1,128)}', space=vmem, size = 0x9000, scoped, tag = 'internal scratch']
  %s0 = inlined_call_operand.hbm [shape: f32[6,1,256], index: 0, kind: input, shape index: {}]
  %s1 = inlined_call_operand.hbm [shape: f32[6,1,256], index: 1, kind: output, shape index: {0}]
  %s2 = inlined_call_operand.hbm [shape: f32[6,1,256], index: 2, kind: output, shape index: {1}]
  %3 = xla_tuple %s1, %s2
  %s4 = sld [smem:[#allocation0]]
  $region49: #{tpu_custom_call.1} parent=0
    _
  %s6 = ssub.s32 1, %s4
  %s7 = scalar_select 0, %s6, %s4
  $region1: #{tpu_custom_call.1} parent=0
    #allocation2 [shape = 'u8[2048]{0}', space=vmem, size = 0x800, scoped, tag = 'input window, operand 0']
    #allocation3 [shape = 's32[2]{0}', space=sflag, size = 0x8, scoped, tag = 'scoped memory for tpu_custom_call.1']
    #allocation4 [shape = 's32[2]{0}', space=sflag, size = 0x8, scoped, tag = 'scoped memory for tpu_custom_call.1']
    #allocation5 [shape = 'u8[2048]{0}', space=vmem, size = 0x800, scoped, tag = 'output window, operand 0']
    #allocation6 [shape = 'u8[2048]{0}', space=vmem, size = 0x800, scoped, tag = 'output window, operand 1']
    #allocation7 [shape = 's32[2]{0}', space=sflag, size = 0x8, scoped, tag = 'scoped memory for tpu_custom_call.1']
    %8 = vsyncpa [#allocation3], 0
    %s9 = scalar_lea.sflag [#allocation3], 1
    %10 = vsyncpa %s9, 0
    %11 = vsyncpa [#allocation4], 0
    %s12 = scalar_lea.sflag [#allocation4], 1
    %13 = vsyncpa %s12, 0
    %14 = vsyncpa [#allocation7], 0
    %s15 = scalar_lea.sflag [#allocation7], 1
    %16 = vsyncpa %s15, 0
    loop: start=0, step=1, limit=8
    $region2: #{tpu_custom_call.1} parent=1 // loop_pre_header
      _
    $region3: #{tpu_custom_call.1} parent=1 // loop_header
      %s18 = sphi 0, %s22
      %p19 = scmp.ge.s32.totalorder %s18, 8
      %s25 = sphi 0, %s37
      %s26 = sphi 0, %s33
      %s27 = sphi 0, %s25
      %s28 = sphi 0, %s26
      %s29 = sphi 0, %s27
      %s30 = sphi 0, %s28
      %s42 = sphi 0, %s44
      %s45 = sphi 0, %s42
      %s46 = sphi 0, %s45
      %s62 = sphi 0, %s46
      %s70 = sphi 0, %s72
      %s73 = sphi 0, %s70
      %s74 = sphi 0, %s73
      %s90 = sphi 0, %s74
      %s98 = sphi 0, %s100
      %s101 = sphi 0, %s98
      %s102 = sphi 0, %s101
      %s118 = sphi 0, %s102
    $region4: #{tpu_custom_call.1} parent=1 // loop_header_branch
      %21 = sbr.rel (%p19) target = $region8
    $region5: #{tpu_custom_call.1} parent=1 // loop_body
      %s23 = ssub.s32 %s18, 1
      %s24 = ssub.s32 %s18, 2
      %s31 = sadd.s32 1, %s26
      %p32 = scmp.ge.s32.totalorder %s31, 1
      %s33 = scalar_select %p32, 0, %s31
      %s34 = sadd.s32 1, %s25
      %s35 = scalar_select %p32, %s34, %s25
      %p36 = scmp.ge.s32.totalorder %s35, 6
      %s37 = scalar_select %p36, 0, %s35
      %s38 = ssub.s32 %s25, %s37
      %s39 = ssub.s32 %s26, %s33
      %s40 = sor.u32 %s38, %s39
      %p41 = scmp.eq.s32.totalorder %s40, 0
      %s43 = sadd.s32 %s42, 1
      %s44 = scalar_select %p41, %s42, %s43
      %p47 = pneg %p41
      %p48 = scmp.eq.s32.totalorder %s18, 5
      %p49 = por %p47, %p48
      %p50 = scmp.ne.s32.totalorder %s42, %s45
      %p51 = scmp.eq.s32.totalorder %s18, 0
      %p52 = por %p50, %p51
      %p53 = scmp.ne.s32.totalorder %s42, %s45
      %p54 = scmp.eq.s32.totalorder %s23, 5
      %p55 = por %p53, %p54
      %p56 = scmp.ne.s32.totalorder %s45, %s46
      %p57 = scmp.eq.s32.totalorder %s23, 0
      %p58 = por %p56, %p57
      %p59 = scmp.ne.s32.totalorder %s45, %s46
      %p60 = scmp.eq.s32.totalorder %s24, 5
      %p61 = por %p59, %p60
      %p63 = scmp.ne.s32.totalorder %s46, %s62
      %p64 = scmp.eq.s32.totalorder %s24, 0
      %p65 = por %p63, %p64
      %s66 = sadd.s32 %s25, %s26
      %s67 = sadd.s32 %s37, %s33
      %s68 = ssub.s32 %s66, %s67
      %p69 = scmp.eq.s32.totalorder %s68, 0
      %s71 = sadd.s32 %s70, 1
      %s72 = scalar_select %p69, %s70, %s71
      %p75 = pneg %p69
      %p76 = scmp.eq.s32.totalorder %s18, 5
      %p77 = por %p75, %p76
      %p78 = scmp.ne.s32.totalorder %s70, %s73
      %p79 = scmp.eq.s32.totalorder %s18, 0
      %p80 = por %p78, %p79
      %p81 = scmp.ne.s32.totalorder %s70, %s73
      %p82 = scmp.eq.s32.totalorder %s23, 5
      %p83 = por %p81, %p82
      %p84 = scmp.ne.s32.totalorder %s73, %s74
      %p85 = scmp.eq.s32.totalorder %s23, 0
      %p86 = por %p84, %p85
      %p87 = scmp.ne.s32.totalorder %s73, %s74
      %p88 = scmp.eq.s32.totalorder %s24, 5
      %p89 = por %p87, %p88
      %p91 = scmp.ne.s32.totalorder %s74, %s90
      %p92 = scmp.eq.s32.totalorder %s24, 0
      %p93 = por %p91, %p92
      %s94 = sadd.s32 %s25, %s26
      %s95 = sadd.s32 %s37, %s33
      %s96 = ssub.s32 %s94, %s95
      %p97 = scmp.eq.s32.totalorder %s96, 0
      %s99 = sadd.s32 %s98, 1
      %s100 = scalar_select %p97, %s98, %s99
      %p103 = pneg %p97
      %p104 = scmp.eq.s32.totalorder %s18, 5
      %p105 = por %p103, %p104
      %p106 = scmp.ne.s32.totalorder %s98, %s101
      %p107 = scmp.eq.s32.totalorder %s18, 0
      %p108 = por %p106, %p107
      %p109 = scmp.ne.s32.totalorder %s98, %s101
      %p110 = scmp.eq.s32.totalorder %s23, 5
      %p111 = por %p109, %p110
      %p112 = scmp.ne.s32.totalorder %s101, %s102
      %p113 = scmp.eq.s32.totalorder %s23, 0
      %p114 = por %p112, %p113
      %p115 = scmp.ne.s32.totalorder %s101, %s102
      %p116 = scmp.eq.s32.totalorder %s24, 5
      %p117 = por %p115, %p116
      %p119 = scmp.ne.s32.totalorder %s102, %s118
      %p120 = scmp.eq.s32.totalorder %s24, 0
      %p121 = por %p119, %p120
      %p122 = scmp.le.s32.totalorder 1, %s18
      %p123 = scmp.lt.s32.totalorder %s18, 7
      %p124 = pnand %p122, %p123
      %p125 = pneg %p124
      // Predicated region
      $region9: #{tpu_custom_call.1} parent=5 // pred_check
        _
      $region10: #{tpu_custom_call.1} parent=5 // pred_check_branch
        %127 = sbr.rel (%p124) target = $region12
      $region11: #{tpu_custom_call.1} parent=5 // pred_region
        %s128 = ssub.s32 %s18, 1
      $region12: #{tpu_custom_call.1} parent=5 // pred_fallthru
        _
      %p129 = scmp.lt.s32.totalorder %s18, 6
      // Predicated region
      $region13: #{tpu_custom_call.1} parent=5 // pred_check
        %p130 = pneg %p129
      $region14: #{tpu_custom_call.1} parent=5 // pred_check_branch
        %132 = sbr.rel (%p130) target = $region16
      $region15: #{tpu_custom_call.1} parent=5 // pred_region
        // Predicated region
        $region17: #{tpu_custom_call.1} parent=15 // pred_check
          %p133 = pneg %p52
        $region18: #{tpu_custom_call.1} parent=15 // pred_check_branch
          %135 = sbr.rel (%p133) target = $region20
        $region19: #{tpu_custom_call.1} parent=15 // pred_region
          %s136 = sand.u32 %s42, 1
          %s137 = scalar_lea.sflag [#allocation3], %s136
          %s138 = sand.u32 %s42, 1
          %s139 = smul.addr %s138, 2
          %s140 = scalar_lea.vmem [#allocation2], %s139
          %142 = vsyncadd %s137, 0
          %s143 = smul.addr %s26, 2
          %s144 = smul.addr %s25, 2
          %s145 = sadd.s32 %s143, %s144
          %s146 = scalar_lea.hbm %s0, %s145
          %s148 = sshll.u32 %s146, 4
          %s149 = int_to_ptr.hbm [resolvable:$true] %s148
          %s150 = sshll.u32 %s140, 4
          %s151 = int_to_ptr.vmem [resolvable:$true] %s150
          %153 = dma.hbm_to_vmem [thread:$0]  %s149, 32, %s151, %s137
        $region20: #{tpu_custom_call.1} parent=15 // pred_fallthru
          _
      $region16: #{tpu_custom_call.1} parent=5 // pred_fallthru
        _
      %p154 = scmp.le.s32.totalorder 1, %s18
      %p155 = scmp.lt.s32.totalorder %s18, 7
      %p156 = pnand %p154, %p155
      %p157 = pneg %p156
      // Predicated region
      $region21: #{tpu_custom_call.1} parent=5 // pred_check
        _
      $region22: #{tpu_custom_call.1} parent=5 // pred_check_branch
        %159 = sbr.rel (%p156) target = $region24
      $region23: #{tpu_custom_call.1} parent=5 // pred_region
        %s160 = ssub.s32 %s18, 1
        %s161 = sand.u32 %s45, 1
        %s162 = scalar_lea.sflag [#allocation3], %s161
        %s163 = sand.u32 %s45, 1
        %s164 = smul.addr %s163, 2
        %s165 = scalar_lea.vmem [#allocation2], %s164
        // Predicated region
        $region25: #{tpu_custom_call.1} parent=23 // pred_check
          %p166 = pneg %p58
        $region26: #{tpu_custom_call.1} parent=23 // pred_check_branch
          %168 = sbr.rel (%p166) target = $region28
        $region27: #{tpu_custom_call.1} parent=23 // pred_region
          %170 = dma.done %s162, 32
        $region28: #{tpu_custom_call.1} parent=23 // pred_fallthru
          _
        %s171 = sand.u32 %s45, 1
        %s172 = scalar_lea.sflag [#allocation3], %s171
        %s173 = sand.u32 %s45, 1
        %s174 = smul.addr %s173, 2
        %s175 = scalar_lea.vmem [#allocation2], %s174
        %p176 = pneg %p58
        %p177 = pneg %p55
        %p178 = pneg %p86
        %p179 = pneg %p83
        %s180 = sand.u32 %s73, 1
        %s181 = scalar_lea.sflag [#allocation4], %s180
        %s182 = sand.u32 %s73, 1
        %s183 = smul.addr %s182, 2
        %s184 = scalar_lea.vmem [#allocation5], %s183
        %p185 = pneg %p114
        %p186 = pneg %p111
        %s187 = sand.u32 %s101, 1
        %s188 = scalar_lea.sflag [#allocation7], %s187
        %s189 = sand.u32 %s101, 1
        %s190 = smul.addr %s189, 2
        %s191 = scalar_lea.vmem [#allocation6], %s190
        %s192 = sadd.s32 %s27, %s28
        %s193 = sadd.s32 %s27, %s28
        %v194 = vld [vmem:[%s165] sm:$0x3]
        %v195 = vadd.f32 %v194, 0.0
        %v196 = vlaneseq
        %vm197 = vcmp.ge.s32.totalorder %v196, 0
        %vm198 = vcmp.lt.s32.totalorder %v196, 256
        %vm199 = vmand %vm197, %vm198
        %200 = vst.msk [vmem:[%s184] sm:$0x3] %vm199, %v195
        %v201 = vmul.f32 %v194, %v194
        %v202 = vadd.f32 %v201, 0.0
        %203 = vst.msk [vmem:[%s191] sm:$0x3] %vm199, %v202
        %s204 = sand.u32 %s73, 1
        %s205 = scalar_lea.sflag [#allocation4], %s204
        %s206 = sand.u32 %s73, 1
        %s207 = smul.addr %s206, 2
        %s208 = scalar_lea.vmem [#allocation5], %s207
        %s209 = sand.u32 %s101, 1
        %s210 = scalar_lea.sflag [#allocation7], %s209
        %s211 = sand.u32 %s101, 1
        %s212 = smul.addr %s211, 2
        %s213 = scalar_lea.vmem [#allocation6], %s212
        // Predicated region
        $region29: #{tpu_custom_call.1} parent=23 // pred_check
          %p214 = pneg %p83
        $region30: #{tpu_custom_call.1} parent=23 // pred_check_branch
          %216 = sbr.rel (%p214) target = $region32
        $region31: #{tpu_custom_call.1} parent=23 // pred_region
          %s217 = sadd.s32 %s27, %s28
          %219 = vsyncadd %s205, 0
          %s220 = smul.addr %s217, 2
          %s221 = scalar_lea.hbm %s1, %s220
          %s223 = sshll.u32 %s208, 4
          %s224 = int_to_ptr.vmem [resolvable:$true] %s223
          %s225 = sshll.u32 %s221, 4
          %s226 = int_to_ptr.hbm [resolvable:$true] %s225
          %228 = dma.vmem_to_hbm [thread:$0]  %s224, 32, %s226, %s205
        $region32: #{tpu_custom_call.1} parent=23 // pred_fallthru
          _
        // Predicated region
        $region33: #{tpu_custom_call.1} parent=23 // pred_check
          %p229 = pneg %p111
        $region34: #{tpu_custom_call.1} parent=23 // pred_check_branch
          %231 = sbr.rel (%p229) target = $region36
        $region35: #{tpu_custom_call.1} parent=23 // pred_region
          %s232 = sadd.s32 %s27, %s28
          %234 = vsyncadd %s210, 0
          %s235 = smul.addr %s232, 2
          %s236 = scalar_lea.hbm %s2, %s235
          %s238 = sshll.u32 %s213, 4
          %s239 = int_to_ptr.vmem [resolvable:$true] %s238
          %s240 = sshll.u32 %s236, 4
          %s241 = int_to_ptr.hbm [resolvable:$true] %s240
          %243 = dma.vmem_to_hbm [thread:$0]  %s239, 32, %s241, %s210
        $region36: #{tpu_custom_call.1} parent=23 // pred_fallthru
          _
      $region24: #{tpu_custom_call.1} parent=5 // pred_fallthru
        _
      %p244 = scmp.le.s32.totalorder 2, %s18
      // Predicated region
      $region37: #{tpu_custom_call.1} parent=5 // pred_check
        %p245 = pneg %p244
      $region38: #{tpu_custom_call.1} parent=5 // pred_check_branch
        %247 = sbr.rel (%p245) target = $region40
      $region39: #{tpu_custom_call.1} parent=5 // pred_region
        %s248 = ssub.s32 %s18, 2
        // Predicated region
        $region41: #{tpu_custom_call.1} parent=39 // pred_check
          %p249 = pneg %p89
        $region42: #{tpu_custom_call.1} parent=39 // pred_check_branch
          %251 = sbr.rel (%p249) target = $region44
        $region43: #{tpu_custom_call.1} parent=39 // pred_region
          %s252 = sand.u32 %s74, 1
          %s253 = scalar_lea.sflag [#allocation4], %s252
          %s254 = sand.u32 %s74, 1
          %s255 = smul.addr %s254, 2
          %s256 = scalar_lea.vmem [#allocation5], %s255
          %258 = dma.done %s253, 32
        $region44: #{tpu_custom_call.1} parent=39 // pred_fallthru
          _
        // Predicated region
        $region45: #{tpu_custom_call.1} parent=39 // pred_check
          %p259 = pneg %p117
        $region46: #{tpu_custom_call.1} parent=39 // pred_check_branch
          %261 = sbr.rel (%p259) target = $region48
        $region47: #{tpu_custom_call.1} parent=39 // pred_region
          %s262 = sand.u32 %s102, 1
          %s263 = scalar_lea.sflag [#allocation7], %s262
          %s264 = sand.u32 %s102, 1
          %s265 = smul.addr %s264, 2
          %s266 = scalar_lea.vmem [#allocation6], %s265
          %268 = dma.done %s263, 32
        $region48: #{tpu_custom_call.1} parent=39 // pred_fallthru
          _
      $region40: #{tpu_custom_call.1} parent=5 // pred_fallthru
        _
    $region6: #{tpu_custom_call.1} parent=1 // loop_footer
      %s22 = sadd.s32 1, %s18
    $region7: #{tpu_custom_call.1} parent=1 // loop_footer_branch
      %17 = sbr.rel target = $region3
    $region8: #{tpu_custom_call.1} parent=1 // loop_exit
      _
    %269 = vsyncpa [#allocation3], 1
    %s270 = scalar_lea.sflag [#allocation3], 1
    %271 = vsyncpa %s270, 1
    %272 = vsyncpa [#allocation4], 1
    %s273 = scalar_lea.sflag [#allocation4], 1
    %274 = vsyncpa %s273, 1
    %275 = vsyncpa [#allocation7], 1
    %s276 = scalar_lea.sflag [#allocation7], 1
    %277 = vsyncpa %s276, 1

</llo_original>
